<compile_context>
chip_gen: v7x
topology: tpu7x:2x2x1
jax: 0.10.0
libtpu: 0.0.40
codegen_flags: <defaults>
</compile_context>

<pallas_src>
import math

import jax
import jax.numpy as jnp
from jax.experimental import pallas as pl
from jax.experimental.pallas import tpu as pltpu

D_MODEL = 32
DIM_T = 16          # dim_t_embed
HALF = DIM_T // 2
T_MIN, T_MAX = 0.001, 10.0
N_OUT = 2           # true output width


def _round_up(x, m):
    return (x + m - 1) // m * m


# --------------------------------------------------------------------------
# Kernel: body MLP only.  bias_ref already contains temb @ W1_t + b1 for this
# batch element (shape (1, D_MODEL)); it broadcasts over the TL rows.
# --------------------------------------------------------------------------
def _body_kernel(f_ref, bias_ref, w1_ref, w2_ref, b2_ref, w3_ref, b3_ref, out_ref):
    mm_dtype = w1_ref.dtype

    # layer 1: f @ W1_f + per-batch time bias (already includes b1) -> ReLU
    x = (jnp.dot(f_ref[...].astype(mm_dtype), w1_ref[...],
                 preferred_element_type=jnp.float32)
         + bias_ref[...])                       # (TL, 32) + (1, 32)
    x = jnp.maximum(x, 0.0)

    # layer 2: @ W2 + b2 -> ReLU
    x = (jnp.dot(x.astype(mm_dtype), w2_ref[...],
                 preferred_element_type=jnp.float32)
         + b2_ref[...])
    x = jnp.maximum(x, 0.0)

    # layer 3: @ W3 + b3, true 2-wide output stored directly
    out = (jnp.dot(x.astype(mm_dtype), w3_ref[...],
                   preferred_element_type=jnp.float32)
           + b3_ref[...])
    out_ref[...] = out.astype(out_ref.dtype)


# --------------------------------------------------------------------------
# Sinusoidal embedding frequencies (compile-time constant)
# --------------------------------------------------------------------------
def sinusoidal_freqs():
    # geometric periods from T_MIN to T_MAX, angular frequencies 2*pi/period
    k = jnp.arange(HALF, dtype=jnp.float32) / max(HALF - 1, 1)
    periods = T_MIN * (T_MAX / T_MIN) ** k
    return (2.0 * math.pi / periods).reshape(1, HALF)


# --------------------------------------------------------------------------
# Wrapper
# --------------------------------------------------------------------------
def noise_predictor(f, t, params, *, matmul_dtype=jnp.bfloat16, tl=2048):
    B, L, d_model = f.shape
    assert d_model == D_MODEL

    # ---- time branch, hoisted to plain JAX (tiny; not worth a kernel) ----
    freqs = sinusoidal_freqs()                                  # (1, HALF)
    ang = t.reshape(B, 1).astype(jnp.float32) * freqs           # (B, HALF)
    emb = jnp.concatenate([jnp.sin(ang), jnp.cos(ang)], -1)     # (B, DIM_T)
    h = jax.nn.gelu(emb @ params["wt1"] + params["bt1"], approximate=False)
    temb = h @ params["wt2"] + params["bt2"]                    # (B, DIM_T)
    # fold temb through the first body layer's t-columns + b1 -> per-batch bias
    bias_b = (temb @ params["w1t"] + params["b1"]).astype(jnp.float32)
    bias_b = bias_b.reshape(B, 1, D_MODEL)                      # (B, 1, D_MODEL)

    # ---- L tiling (rows per grid step) ----
    tl_eff = min(tl, _round_up(L, 8))
    if B == 1:
        # keep >=2 parallel grid steps so v7x's 2 TensorCores both get work
        tl_eff = min(tl_eff, max(8, _round_up(-(-L // 2), 8)))
    l_pad = _round_up(L, tl_eff)
    f_pad = f
    if l_pad != L:
        f_pad = jnp.pad(f, ((0, 0), (0, l_pad - L), (0, 0)))

    # ---- weights: matmul inputs in matmul_dtype, VPU adds stay f32 ----
    w1 = params["w1f"].astype(matmul_dtype)
    w2 = params["w2"].astype(matmul_dtype)
    w3 = params["w3"].astype(matmul_dtype)
    b2 = params["b2"].astype(jnp.float32)
    b3 = params["b3"].astype(jnp.float32)

    grid = (B, l_pad // tl_eff)

    full = lambda arr: pl.BlockSpec(arr.shape, lambda b, l: (0,) * arr.ndim)

    itemsize = jnp.dtype(matmul_dtype).itemsize
    rows = B * l_pad
    flops = 2 * rows * (2 * D_MODEL * D_MODEL + D_MODEL * N_OUT)
    bytes_accessed = (rows * D_MODEL * f.dtype.itemsize         # f read
                      + rows * N_OUT * 4                        # out write
                      + B * D_MODEL * 4                         # per-batch bias
                      + (2 * D_MODEL * D_MODEL + D_MODEL * N_OUT) * itemsize
                      + (D_MODEL + N_OUT) * 4)                  # b2, b3

    out = pl.pallas_call(
        _body_kernel,
        out_shape=jax.ShapeDtypeStruct((B, l_pad, N_OUT), jnp.float32),
        grid_spec=pl.GridSpec(
            grid=grid,
            in_specs=[
                pl.BlockSpec((None, tl_eff, D_MODEL), lambda b, l: (b, l, 0)),
                pl.BlockSpec((None, 1, D_MODEL), lambda b, l: (b, 0, 0)),
                full(w1), full(w2), full(b2), full(w3), full(b3),
            ],
            out_specs=pl.BlockSpec((None, tl_eff, N_OUT), lambda b, l: (b, l, 0)),
        ),
        compiler_params=pltpu.CompilerParams(
            dimension_semantics=("parallel", "parallel")),
        cost_estimate=pl.CostEstimate(
            flops=flops, transcendentals=0, bytes_accessed=bytes_accessed),
    )(f_pad, bias_b, w1, w2, b2, w3, b3)

    return out[:, :L, :]


# --------------------------------------------------------------------------
# Params & pure-JAX reference
# --------------------------------------------------------------------------
def init_params(key):
    ks = jax.random.split(key, 12)
    n = lambda k, shp: (0.1 * jax.random.normal(k, shp, jnp.float32))
    return {
        # time_mlp: Linear(DIM_T, DIM_T), GELU, Linear(DIM_T, DIM_T)
        "wt1": n(ks[0], (DIM_T, DIM_T)), "bt1": n(ks[1], (1, DIM_T)),
        "wt2": n(ks[2], (DIM_T, DIM_T)), "bt2": n(ks[3], (1, DIM_T)),
        # body Linear(D_MODEL + DIM_T, D_MODEL) split into f-part and t-part
        "w1f": n(ks[4], (D_MODEL, D_MODEL)), "w1t": n(ks[5], (DIM_T, D_MODEL)),
        "b1": n(ks[6], (1, D_MODEL)),
        "w2": n(ks[7], (D_MODEL, D_MODEL)), "b2": n(ks[8], (1, D_MODEL)),
        "w3": n(ks[9], (D_MODEL, N_OUT)), "b3": n(ks[10], (1, N_OUT)),
    }


def reference_forward(f, t, params):
    """Pure-JAX f32 reference mirroring the PyTorch forward."""
    B, L, _ = f.shape
    freqs = sinusoidal_freqs()
    ang = t.reshape(B, 1) * freqs                               # (B, HALF)
    t_sin = jnp.concatenate([jnp.sin(ang), jnp.cos(ang)], -1)   # (B, DIM_T)
    h = jax.nn.gelu(t_sin @ params["wt1"] + params["bt1"], approximate=False)
    temb = h @ params["wt2"] + params["bt2"]                    # (B, DIM_T)
    temb = jnp.broadcast_to(temb[:, None, :], (B, L, DIM_T))    # unsqueeze+repeat
    x = jnp.concatenate([f, temb], axis=-1)                     # (B, L, D+DIM_T)
    w1 = jnp.concatenate([params["w1f"], params["w1t"]], axis=0)
    x = jax.nn.relu(x @ w1 + params["b1"])
    x = jax.nn.relu(x @ params["w2"] + params["b2"])
    return x @ params["w3"] + params["b3"]


if __name__ == "__main__":
    key = jax.random.PRNGKey(0)
    k_f, k_t, k_p = jax.random.split(key, 3)
    B, L = 2, 8
    f = jax.random.normal(k_f, (B, L, D_MODEL), jnp.float32)
    t = jax.random.uniform(k_t, (B, 1), jnp.float32, minval=T_MIN, maxval=T_MAX)
    params = init_params(k_p)

    # bf16 matmul inputs (fast path on all generations), f32 accumulation.
    out = noise_predictor(f, t, params, matmul_dtype=jnp.bfloat16)
    jax.block_until_ready(out)

    ref = reference_forward(f, t, params)
    assert out.shape == (B, L, N_OUT), out.shape
    err = float(jnp.max(jnp.abs(out - ref)))
    # bf16 matmul inputs => relaxed tolerance vs the f32 reference.
    assert err < 2e-2, err

    # f32 path sanity check (tight tolerance, validation escape hatch).
    out_f32 = noise_predictor(f, t, params, matmul_dtype=jnp.float32)
    jax.block_until_ready(out_f32)
    err32 = float(jnp.max(jnp.abs(out_f32 - ref)))
    assert err32 < 1e-5, err32

    print("KERNEL_OK")
</pallas_src>

<mosaic_0001>
module attributes {stable_mosaic.version = 11 : i64} {
  func.func @_body_kernel(%arg0: i32, %arg1: i32, %arg2: memref<1x8x32xf32, #tpu.memory_space<vmem>>, %arg3: memref<1x1x32xf32, #tpu.memory_space<vmem>>, %arg4: memref<32x32xbf16, #tpu.memory_space<vmem>>, %arg5: memref<32x32xbf16, #tpu.memory_space<vmem>>, %arg6: memref<1x32xf32, #tpu.memory_space<vmem>>, %arg7: memref<32x2xbf16, #tpu.memory_space<vmem>>, %arg8: memref<1x2xf32, #tpu.memory_space<vmem>>, %arg9: memref<1x8x2xf32, #tpu.memory_space<vmem>>) attributes {dimension_semantics = [#tpu.dimension_semantics<parallel>, #tpu.dimension_semantics<parallel>], iteration_bounds = array<i64: 2, 1>, scalar_prefetch = 0 : i64, scratch_operands = 0 : i64, tpu.core_type = #tpu.core_type<tc>, window_params = [{transform_indices = @transform_0, window_bounds = array<i64: 1, 8, 32>}, {transform_indices = @transform_1, window_bounds = array<i64: 1, 1, 32>}, {pipeline_mode = #tpu.pipeline_mode<synchronous>, transform_indices = @transform_2, window_bounds = array<i64: 32, 32>}, {pipeline_mode = #tpu.pipeline_mode<synchronous>, transform_indices = @transform_3, window_bounds = array<i64: 32, 32>}, {pipeline_mode = #tpu.pipeline_mode<synchronous>, transform_indices = @transform_4, window_bounds = array<i64: 1, 32>}, {pipeline_mode = #tpu.pipeline_mode<synchronous>, transform_indices = @transform_5, window_bounds = array<i64: 32, 2>}, {pipeline_mode = #tpu.pipeline_mode<synchronous>, transform_indices = @transform_6, window_bounds = array<i64: 1, 2>}, {transform_indices = @transform_7, window_bounds = array<i64: 1, 8, 2>}]} {
    %c0 = arith.constant 0 : index
    %c0_0 = arith.constant 0 : index
    %c0_1 = arith.constant 0 : index
    %0 = vector.load %arg2[%c0, %c0_0, %c0_1] : memref<1x8x32xf32, #tpu.memory_space<vmem>>, vector<1x8x32xf32>
    %1 = vector.shape_cast %0 : vector<1x8x32xf32> to vector<8x32xf32>
    %2 = arith.truncf %1 : vector<8x32xf32> to vector<8x32xbf16>
    %c0_2 = arith.constant 0 : index
    %c0_3 = arith.constant 0 : index
    %3 = vector.load %arg4[%c0_2, %c0_3] : memref<32x32xbf16, #tpu.memory_space<vmem>>, vector<32x32xbf16>
    %cst = arith.constant dense<0.000000e+00> : vector<8x32xf32>
    %4 = tpu.matmul %2, %3, %cst {dimension_numbers = #tpu.dot_dimension_numbers<[1], [0], [0], [1], [0, 0, 1, 1], [], []>} : vector<8x32xbf16>, vector<32x32xbf16>, vector<8x32xf32> -> vector<8x32xf32>
    %c0_4 = arith.constant 0 : index
    %c0_5 = arith.constant 0 : index
    %c0_6 = arith.constant 0 : index
    %5 = vector.load %arg3[%c0_4, %c0_5, %c0_6] : memref<1x1x32xf32, #tpu.memory_space<vmem>>, vector<1x1x32xf32>
    %6 = vector.shape_cast %5 : vector<1x1x32xf32> to vector<1x32xf32>
    %7 = vector.broadcast %6 : vector<1x32xf32> to vector<8x32xf32>
    %8 = arith.addf %4, %7 : vector<8x32xf32>
    %cst_7 = arith.constant 0.000000e+00 : f32
    %9 = vector.broadcast %cst_7 : f32 to vector<8x32xf32>
    %10 = arith.maximumf %8, %9 : vector<8x32xf32>
    %11 = arith.truncf %10 : vector<8x32xf32> to vector<8x32xbf16>
    %c0_8 = arith.constant 0 : index
    %c0_9 = arith.constant 0 : index
    %12 = vector.load %arg5[%c0_8, %c0_9] : memref<32x32xbf16, #tpu.memory_space<vmem>>, vector<32x32xbf16>
    %cst_10 = arith.constant dense<0.000000e+00> : vector<8x32xf32>
    %13 = tpu.matmul %11, %12, %cst_10 {dimension_numbers = #tpu.dot_dimension_numbers<[1], [0], [0], [1], [0, 0, 1, 1], [], []>} : vector<8x32xbf16>, vector<32x32xbf16>, vector<8x32xf32> -> vector<8x32xf32>
    %c0_11 = arith.constant 0 : index
    %c0_12 = arith.constant 0 : index
    %14 = vector.load %arg6[%c0_11, %c0_12] : memref<1x32xf32, #tpu.memory_space<vmem>>, vector<1x32xf32>
    %15 = vector.broadcast %14 : vector<1x32xf32> to vector<8x32xf32>
    %16 = arith.addf %13, %15 : vector<8x32xf32>
    %cst_13 = arith.constant 0.000000e+00 : f32
    %17 = vector.broadcast %cst_13 : f32 to vector<8x32xf32>
    %18 = arith.maximumf %16, %17 : vector<8x32xf32>
    %19 = arith.truncf %18 : vector<8x32xf32> to vector<8x32xbf16>
    %c0_14 = arith.constant 0 : index
    %c0_15 = arith.constant 0 : index
    %20 = vector.load %arg7[%c0_14, %c0_15] : memref<32x2xbf16, #tpu.memory_space<vmem>>, vector<32x2xbf16>
    %cst_16 = arith.constant dense<0.000000e+00> : vector<8x2xf32>
    %21 = tpu.matmul %19, %20, %cst_16 {dimension_numbers = #tpu.dot_dimension_numbers<[1], [0], [0], [1], [0, 0, 1, 1], [], []>} : vector<8x32xbf16>, vector<32x2xbf16>, vector<8x2xf32> -> vector<8x2xf32>
    %c0_17 = arith.constant 0 : index
    %c0_18 = arith.constant 0 : index
    %22 = vector.load %arg8[%c0_17, %c0_18] : memref<1x2xf32, #tpu.memory_space<vmem>>, vector<1x2xf32>
    %23 = vector.broadcast %22 : vector<1x2xf32> to vector<8x2xf32>
    %24 = arith.addf %21, %23 : vector<8x2xf32>
    %c0_19 = arith.constant 0 : index
    %c0_20 = arith.constant 0 : index
    %c0_21 = arith.constant 0 : index
    %25 = vector.load %arg9[%c0_19, %c0_20, %c0_21] : memref<1x8x2xf32, #tpu.memory_space<vmem>>, vector<1x8x2xf32>
    %26 = vector.shape_cast %25 : vector<1x8x2xf32> to vector<8x2xf32>
    %27 = vector.shape_cast %24 : vector<8x2xf32> to vector<1x8x2xf32>
    tpu.vector_store %arg9[%c0_19, %c0_20, %c0_21], %27 {strides = array<i32>} : memref<1x8x2xf32, #tpu.memory_space<vmem>>, vector<1x8x2xf32>,
    return
  }
  func.func @transform_0(%arg0: i32, %arg1: i32) -> (i32, i32, i32) {
    %c0_i32 = arith.constant 0 : i32
    %c0_i32_0 = arith.constant 0 : i32
    return %arg0, %arg1, %c0_i32 : i32, i32, i32
  }
  func.func @transform_1(%arg0: i32, %arg1: i32) -> (i32, i32, i32) {
    %c0_i32 = arith.constant 0 : i32
    %c0_i32_0 = arith.constant 0 : i32
    %c0_i32_1 = arith.constant 0 : i32
    return %arg0, %c0_i32, %c0_i32_0 : i32, i32, i32
  }
  func.func @transform_2(%arg0: i32, %arg1: i32) -> (i32, i32) {
    %c0_i32 = arith.constant 0 : i32
    %c0_i32_0 = arith.constant 0 : i32
    %c0_i32_1 = arith.constant 0 : i32
    return %c0_i32, %c0_i32_0 : i32, i32
  }
  func.func @transform_3(%arg0: i32, %arg1: i32) -> (i32, i32) {
    %c0_i32 = arith.constant 0 : i32
    %c0_i32_0 = arith.constant 0 : i32
    %c0_i32_1 = arith.constant 0 : i32
    return %c0_i32, %c0_i32_0 : i32, i32
  }
  func.func @transform_4(%arg0: i32, %arg1: i32) -> (i32, i32) {
    %c0_i32 = arith.constant 0 : i32
    %c0_i32_0 = arith.constant 0 : i32
    %c0_i32_1 = arith.constant 0 : i32
    return %c0_i32, %c0_i32_0 : i32, i32
  }
  func.func @transform_5(%arg0: i32, %arg1: i32) -> (i32, i32) {
    %c0_i32 = arith.constant 0 : i32
    %c0_i32_0 = arith.constant 0 : i32
    %c0_i32_1 = arith.constant 0 : i32
    return %c0_i32, %c0_i32_0 : i32, i32
  }
  func.func @transform_6(%arg0: i32, %arg1: i32) -> (i32, i32) {
    %c0_i32 = arith.constant 0 : i32
    %c0_i32_0 = arith.constant 0 : i32
    %c0_i32_1 = arith.constant 0 : i32
    return %c0_i32, %c0_i32_0 : i32, i32
  }
  func.func @transform_7(%arg0: i32, %arg1: i32) -> (i32, i32, i32) {
    %c0_i32 = arith.constant 0 : i32
    %c0_i32_0 = arith.constant 0 : i32
    return %arg0, %arg1, %c0_i32 : i32, i32, i32
  }
}

</mosaic_0001>

<llo_original>
// kernel: tpu_custom_call.1
$region0: #{tpu_custom_call.1}
  #allocation0 [shape = 'u32[]', space=smem, size = 0x4, offset = 0x4, fixed_abs, tag = 'smem constant byte address 0x4 - core index']
  #allocation1 [shape = 'u32[144,128]{1,0:T(1,128)}', space=vmem, size = 0x12000, scoped, tag = 'internal scratch']
  %s0 = inlined_call_operand.vmem [shape: f32[2,8,32], index: 0, kind: input, shape index: {}]
  %s1 = inlined_call_operand.vmem [shape: f32[2,1,32], index: 1, kind: input, shape index: {}]
  %s2 = inlined_call_operand.hbm [shape: bf16[32,32], index: 2, kind: input, shape index: {}]
  %s3 = inlined_call_operand.hbm [shape: bf16[32,32], index: 3, kind: input, shape index: {}]
  %s4 = inlined_call_operand.vmem [shape: f32[1,32], index: 4, kind: input, shape index: {}]
  %s5 = inlined_call_operand.vmem [shape: bf16[32,2], index: 5, kind: input, shape index: {}]
  %s6 = inlined_call_operand.vmem [shape: f32[1,2], index: 6, kind: input, shape index: {}]
  %s7 = inlined_call_operand.vmem [shape: f32[2,8,2], index: 7, kind: output, shape index: {}]
  %s8 = sld [smem:[#allocation0]]
  $region69: #{tpu_custom_call.1} parent=0
    _
  %s10 = ssub.s32 1, %s8
  %s11 = scalar_select 0, %s10, %s8
  $region1: #{tpu_custom_call.1} parent=0
    #allocation2 [shape = 'u8[8192]{0}', space=vmem, size = 0x2000, scoped, tag = 'input window, operand 2, single buffered']
    #allocation3 [shape = 's32[2]{0}', space=sflag, size = 0x8, scoped, tag = 'scoped memory for tpu_custom_call.1']
    #allocation4 [shape = 'u8[8192]{0}', space=vmem, size = 0x2000, scoped, tag = 'input window, operand 3, single buffered']
    #allocation5 [shape = 's32[1]{0}', space=sflag, size = 0x4, scoped, tag = 'scoped memory for tpu_custom_call.1']
    %12 = vsyncpa [#allocation3], 0
    %13 = vsyncpa [#allocation5], 0
    loop: start=0, step=1, limit=4
    $region2: #{tpu_custom_call.1} parent=1 // loop_pre_header
      _
    $region3: #{tpu_custom_call.1} parent=1 // loop_header
      %s15 = sphi 0, %s19
      %p16 = scmp.ge.s32.totalorder %s15, 4
      %s22 = sphi 0, %s34
      %s23 = sphi 0, %s30
      %s24 = sphi 0, %s22
      %s25 = sphi 0, %s23
      %s26 = sphi 0, %s24
      %s27 = sphi 0, %s25
      %s39 = sphi 0, %s41
      %s42 = sphi 0, %s39
      %s43 = sphi 0, %s42
      %s59 = sphi 0, %s43
      %s65 = sphi 0, %s67
      %s68 = sphi 0, %s65
      %s69 = sphi 0, %s68
      %s85 = sphi 0, %s69
      %s89 = sphi 0, %s89
      %s91 = sphi 0, %s89
      %s92 = sphi 0, %s91
      %s106 = sphi 0, %s92
      %s110 = sphi 0, %s110
      %s112 = sphi 0, %s110
      %s113 = sphi 0, %s112
      %s127 = sphi 0, %s113
      %s131 = sphi 0, %s131
      %s133 = sphi 0, %s131
      %s134 = sphi 0, %s133
      %s148 = sphi 0, %s134
      %s152 = sphi 0, %s152
      %s154 = sphi 0, %s152
      %s155 = sphi 0, %s154
      %s169 = sphi 0, %s155
      %s173 = sphi 0, %s173
      %s175 = sphi 0, %s173
      %s176 = sphi 0, %s175
      %s190 = sphi 0, %s176
      %s198 = sphi 0, %s200
      %s201 = sphi 0, %s198
      %s202 = sphi 0, %s201
      %s218 = sphi 0, %s202
    $region4: #{tpu_custom_call.1} parent=1 // loop_header_branch
      %18 = sbr.rel (%p16) target = $region8
    $region5: #{tpu_custom_call.1} parent=1 // loop_body
      %s20 = ssub.s32 %s15, 1
      %s21 = ssub.s32 %s15, 2
      %s28 = sadd.s32 1, %s23
      %p29 = scmp.ge.s32.totalorder %s28, 1
      %s30 = scalar_select %p29, 0, %s28
      %s31 = sadd.s32 1, %s22
      %s32 = scalar_select %p29, %s31, %s22
      %p33 = scmp.ge.s32.totalorder %s32, 2
      %s34 = scalar_select %p33, 0, %s32
      %s35 = ssub.s32 %s22, %s34
      %s36 = ssub.s32 %s23, %s30
      %s37 = sor.u32 %s35, %s36
      %p38 = scmp.eq.s32.totalorder %s37, 0
      %s40 = sadd.s32 %s39, 1
      %s41 = scalar_select %p38, %s39, %s40
      %p44 = pneg %p38
      %p45 = scmp.eq.s32.totalorder %s15, 1
      %p46 = por %p44, %p45
      %p47 = scmp.ne.s32.totalorder %s39, %s42
      %p48 = scmp.eq.s32.totalorder %s15, 0
      %p49 = por %p47, %p48
      %p50 = scmp.ne.s32.totalorder %s39, %s42
      %p51 = scmp.eq.s32.totalorder %s20, 1
      %p52 = por %p50, %p51
      %p53 = scmp.ne.s32.totalorder %s42, %s43
      %p54 = scmp.eq.s32.totalorder %s20, 0
      %p55 = por %p53, %p54
      %p56 = scmp.ne.s32.totalorder %s42, %s43
      %p57 = scmp.eq.s32.totalorder %s21, 1
      %p58 = por %p56, %p57
      %p60 = scmp.ne.s32.totalorder %s43, %s59
      %p61 = scmp.eq.s32.totalorder %s21, 0
      %p62 = por %p60, %p61
      %s63 = ssub.s32 %s22, %s34
      %p64 = scmp.eq.s32.totalorder %s63, 0
      %s66 = sadd.s32 %s65, 1
      %s67 = scalar_select %p64, %s65, %s66
      %p70 = pneg %p64
      %p71 = scmp.eq.s32.totalorder %s15, 1
      %p72 = por %p70, %p71
      %p73 = scmp.ne.s32.totalorder %s65, %s68
      %p74 = scmp.eq.s32.totalorder %s15, 0
      %p75 = por %p73, %p74
      %p76 = scmp.ne.s32.totalorder %s65, %s68
      %p77 = scmp.eq.s32.totalorder %s20, 1
      %p78 = por %p76, %p77
      %p79 = scmp.ne.s32.totalorder %s68, %s69
      %p80 = scmp.eq.s32.totalorder %s20, 0
      %p81 = por %p79, %p80
      %p82 = scmp.ne.s32.totalorder %s68, %s69
      %p83 = scmp.eq.s32.totalorder %s21, 1
      %p84 = por %p82, %p83
      %p86 = scmp.ne.s32.totalorder %s69, %s85
      %p87 = scmp.eq.s32.totalorder %s21, 0
      %p88 = por %p86, %p87
      %s90 = sadd.s32 %s89, 1
      %p93 = scmp.eq.s32.totalorder %s15, 1
      %p94 = scmp.ne.s32.totalorder %s89, %s91
      %p95 = scmp.eq.s32.totalorder %s15, 0
      %p96 = por %p94, %p95
      %p97 = scmp.ne.s32.totalorder %s89, %s91
      %p98 = scmp.eq.s32.totalorder %s20, 1
      %p99 = por %p97, %p98
      %p100 = scmp.ne.s32.totalorder %s91, %s92
      %p101 = scmp.eq.s32.totalorder %s20, 0
      %p102 = por %p100, %p101
      %p103 = scmp.ne.s32.totalorder %s91, %s92
      %p104 = scmp.eq.s32.totalorder %s21, 1
      %p105 = por %p103, %p104
      %p107 = scmp.ne.s32.totalorder %s92, %s106
      %p108 = scmp.eq.s32.totalorder %s21, 0
      %p109 = por %p107, %p108
      %s111 = sadd.s32 %s110, 1
      %p114 = scmp.eq.s32.totalorder %s15, 1
      %p115 = scmp.ne.s32.totalorder %s110, %s112
      %p116 = scmp.eq.s32.totalorder %s15, 0
      %p117 = por %p115, %p116
      %p118 = scmp.ne.s32.totalorder %s110, %s112
      %p119 = scmp.eq.s32.totalorder %s20, 1
      %p120 = por %p118, %p119
      %p121 = scmp.ne.s32.totalorder %s112, %s113
      %p122 = scmp.eq.s32.totalorder %s20, 0
      %p123 = por %p121, %p122
      %p124 = scmp.ne.s32.totalorder %s112, %s113
      %p125 = scmp.eq.s32.totalorder %s21, 1
      %p126 = por %p124, %p125
      %p128 = scmp.ne.s32.totalorder %s113, %s127
      %p129 = scmp.eq.s32.totalorder %s21, 0
      %p130 = por %p128, %p129
      %s132 = sadd.s32 %s131, 1
      %p135 = scmp.eq.s32.totalorder %s15, 1
      %p136 = scmp.ne.s32.totalorder %s131, %s133
      %p137 = scmp.eq.s32.totalorder %s15, 0
      %p138 = por %p136, %p137
      %p139 = scmp.ne.s32.totalorder %s131, %s133
      %p140 = scmp.eq.s32.totalorder %s20, 1
      %p141 = por %p139, %p140
      %p142 = scmp.ne.s32.totalorder %s133, %s134
      %p143 = scmp.eq.s32.totalorder %s20, 0
      %p144 = por %p142, %p143
      %p145 = scmp.ne.s32.totalorder %s133, %s134
      %p146 = scmp.eq.s32.totalorder %s21, 1
      %p147 = por %p145, %p146
      %p149 = scmp.ne.s32.totalorder %s134, %s148
      %p150 = scmp.eq.s32.totalorder %s21, 0
      %p151 = por %p149, %p150
      %s153 = sadd.s32 %s152, 1
      %p156 = scmp.eq.s32.totalorder %s15, 1
      %p157 = scmp.ne.s32.totalorder %s152, %s154
      %p158 = scmp.eq.s32.totalorder %s15, 0
      %p159 = por %p157, %p158
      %p160 = scmp.ne.s32.totalorder %s152, %s154
      %p161 = scmp.eq.s32.totalorder %s20, 1
      %p162 = por %p160, %p161
      %p163 = scmp.ne.s32.totalorder %s154, %s155
      %p164 = scmp.eq.s32.totalorder %s20, 0
      %p165 = por %p163, %p164
      %p166 = scmp.ne.s32.totalorder %s154, %s155
      %p167 = scmp.eq.s32.totalorder %s21, 1
      %p168 = por %p166, %p167
      %p170 = scmp.ne.s32.totalorder %s155, %s169
      %p171 = scmp.eq.s32.totalorder %s21, 0
      %p172 = por %p170, %p171
      %s174 = sadd.s32 %s173, 1
      %p177 = scmp.eq.s32.totalorder %s15, 1
      %p178 = scmp.ne.s32.totalorder %s173, %s175
      %p179 = scmp.eq.s32.totalorder %s15, 0
      %p180 = por %p178, %p179
      %p181 = scmp.ne.s32.totalorder %s173, %s175
      %p182 = scmp.eq.s32.totalorder %s20, 1
      %p183 = por %p181, %p182
      %p184 = scmp.ne.s32.totalorder %s175, %s176
      %p185 = scmp.eq.s32.totalorder %s20, 0
      %p186 = por %p184, %p185
      %p187 = scmp.ne.s32.totalorder %s175, %s176
      %p188 = scmp.eq.s32.totalorder %s21, 1
      %p189 = por %p187, %p188
      %p191 = scmp.ne.s32.totalorder %s176, %s190
      %p192 = scmp.eq.s32.totalorder %s21, 0
      %p193 = por %p191, %p192
      %s194 = ssub.s32 %s22, %s34
      %s195 = ssub.s32 %s23, %s30
      %s196 = sor.u32 %s194, %s195
      %p197 = scmp.eq.s32.totalorder %s196, 0
      %s199 = sadd.s32 %s198, 1
      %s200 = scalar_select %p197, %s198, %s199
      %p203 = pneg %p197
      %p204 = scmp.eq.s32.totalorder %s15, 1
      %p205 = por %p203, %p204
      %p206 = scmp.ne.s32.totalorder %s198, %s201
      %p207 = scmp.eq.s32.totalorder %s15, 0
      %p208 = por %p206, %p207
      %p209 = scmp.ne.s32.totalorder %s198, %s201
      %p210 = scmp.eq.s32.totalorder %s20, 1
      %p211 = por %p209, %p210
      %p212 = scmp.ne.s32.totalorder %s201, %s202
      %p213 = scmp.eq.s32.totalorder %s20, 0
      %p214 = por %p212, %p213
      %p215 = scmp.ne.s32.totalorder %s201, %s202
      %p216 = scmp.eq.s32.totalorder %s21, 1
      %p217 = por %p215, %p216
      %p219 = scmp.ne.s32.totalorder %s202, %s218
      %p220 = scmp.eq.s32.totalorder %s21, 0
      %p221 = por %p219, %p220
      %p222 = scmp.le.s32.totalorder 1, %s15
      %p223 = scmp.lt.s32.totalorder %s15, 3
      %p224 = pnand %p222, %p223
      %p225 = pneg %p224
      // Predicated region
      $region9: #{tpu_custom_call.1} parent=5 // pred_check
        _
      $region10: #{tpu_custom_call.1} parent=5 // pred_check_branch
        %227 = sbr.rel (%p224) target = $region12
      $region11: #{tpu_custom_call.1} parent=5 // pred_region
        %s228 = ssub.s32 %s15, 1
        // Predicated region
        $region13: #{tpu_custom_call.1} parent=11 // pred_check
          %p229 = pneg %p102
        $region14: #{tpu_custom_call.1} parent=11 // pred_check_branch
          %231 = sbr.rel (%p229) target = $region16
        $region15: #{tpu_custom_call.1} parent=11 // pred_region
          %s233 = ssub.s32 256, 256
          %234 = vsyncadd [#allocation3], %s233
          %s235 = sshll.u32 [#allocation2], 4
          %s236 = int_to_ptr.vmem [resolvable:$true] %s235
          %241 = dma.hbm_to_vmem [thread:$0]  %s2, 256, %s236, [#allocation3], 64, 64, 4
        $region16: #{tpu_custom_call.1} parent=11 // pred_fallthru
          _
        // Predicated region
        $region17: #{tpu_custom_call.1} parent=11 // pred_check
          %p242 = pneg %p123
        $region18: #{tpu_custom_call.1} parent=11 // pred_check_branch
          %244 = sbr.rel (%p242) target = $region20
        $region19: #{tpu_custom_call.1} parent=11 // pred_region
          %s246 = ssub.s32 256, 256
          %247 = vsyncadd [#allocation5], %s246
          %s248 = sshll.u32 [#allocation4], 4
          %s249 = int_to_ptr.vmem [resolvable:$true] %s248
          %254 = dma.hbm_to_vmem [thread:$0]  %s3, 256, %s249, [#allocation5], 64, 64, 4
        $region20: #{tpu_custom_call.1} parent=11 // pred_fallthru
          _
        // Predicated region
        $region21: #{tpu_custom_call.1} parent=11 // pred_check
          %p255 = pneg %p144
        $region22: #{tpu_custom_call.1} parent=11 // pred_check_branch
          %257 = sbr.rel (%p255) target = $region24
        $region23: #{tpu_custom_call.1} parent=11 // pred_region
          _
        $region24: #{tpu_custom_call.1} parent=11 // pred_fallthru
          _
        // Predicated region
        $region25: #{tpu_custom_call.1} parent=11 // pred_check
          %p258 = pneg %p165
        $region26: #{tpu_custom_call.1} parent=11 // pred_check_branch
          %260 = sbr.rel (%p258) target = $region28
        $region27: #{tpu_custom_call.1} parent=11 // pred_region
          _
        $region28: #{tpu_custom_call.1} parent=11 // pred_fallthru
          _
        // Predicated region
        $region29: #{tpu_custom_call.1} parent=11 // pred_check
          %p261 = pneg %p186
        $region30: #{tpu_custom_call.1} parent=11 // pred_check_branch
          %263 = sbr.rel (%p261) target = $region32
        $region31: #{tpu_custom_call.1} parent=11 // pred_region
          _
        $region32: #{tpu_custom_call.1} parent=11 // pred_fallthru
          _
      $region12: #{tpu_custom_call.1} parent=5 // pred_fallthru
        _
      %p264 = scmp.lt.s32.totalorder %s15, 2
      // Predicated region
      $region33: #{tpu_custom_call.1} parent=5 // pred_check
        %p265 = pneg %p264
      $region34: #{tpu_custom_call.1} parent=5 // pred_check_branch
        %267 = sbr.rel (%p265) target = $region36
      $region35: #{tpu_custom_call.1} parent=5 // pred_region
        // Predicated region
        $region37: #{tpu_custom_call.1} parent=35 // pred_check
          %p268 = pneg %p49
        $region38: #{tpu_custom_call.1} parent=35 // pred_check_branch
          %270 = sbr.rel (%p268) target = $region40
        $region39: #{tpu_custom_call.1} parent=35 // pred_region
          %p271 = scmp.lt.s32.totalorder %s22, 1
          %s272 = scalar_select %p271, %s22, 1
          %p273 = scmp.lt.s32.totalorder %s23, 0
          %s274 = scalar_select %p273, %s23, 0
          %s275 = sadd.s32 %s274, %s272
          %s276 = smul.addr %s275, 8
          %s277 = scalar_lea.vmem %s0, %s276
        $region40: #{tpu_custom_call.1} parent=35 // pred_fallthru
          _
        // Predicated region
        $region41: #{tpu_custom_call.1} parent=35 // pred_check
          %p278 = pneg %p75
        $region42: #{tpu_custom_call.1} parent=35 // pred_check_branch
          %280 = sbr.rel (%p278) target = $region44
        $region43: #{tpu_custom_call.1} parent=35 // pred_region
          %p281 = scmp.lt.s32.totalorder %s22, 1
          %s282 = scalar_select %p281, %s22, 1
          %s283 = scalar_lea.vmem %s1, %s282
        $region44: #{tpu_custom_call.1} parent=35 // pred_fallthru
          _
      $region36: #{tpu_custom_call.1} parent=5 // pred_fallthru
        _
      %p284 = scmp.le.s32.totalorder 1, %s15
      %p285 = scmp.lt.s32.totalorder %s15, 3
      %p286 = pnand %p284, %p285
      %p287 = pneg %p286
      // Predicated region
      $region45: #{tpu_custom_call.1} parent=5 // pred_check
        _
      $region46: #{tpu_custom_call.1} parent=5 // pred_check_branch
        %289 = sbr.rel (%p286) target = $region48
      $region47: #{tpu_custom_call.1} parent=5 // pred_region
        %s290 = ssub.s32 %s15, 1
        // Predicated region
        $region49: #{tpu_custom_call.1} parent=47 // pred_check
          %p291 = pneg %p102
        $region50: #{tpu_custom_call.1} parent=47 // pred_check_branch
          %293 = sbr.rel (%p291) target = $region52
        $region51: #{tpu_custom_call.1} parent=47 // pred_region
          %294 = dma.done [#allocation3], 256
        $region52: #{tpu_custom_call.1} parent=47 // pred_fallthru
          _
        // Predicated region
        $region53: #{tpu_custom_call.1} parent=47 // pred_check
          %p295 = pneg %p123
        $region54: #{tpu_custom_call.1} parent=47 // pred_check_branch
          %297 = sbr.rel (%p295) target = $region56
        $region55: #{tpu_custom_call.1} parent=47 // pred_region
          %298 = dma.done [#allocation5], 256
        $region56: #{tpu_custom_call.1} parent=47 // pred_fallthru
          _
        %p299 = scmp.lt.s32.totalorder %s24, 1
        %s300 = scalar_select %p299, %s24, 1
        %p301 = scmp.lt.s32.totalorder %s25, 0
        %s302 = scalar_select %p301, %s25, 0
        %s303 = sadd.s32 %s302, %s300
        %s304 = smul.addr %s303, 8
        %s305 = scalar_lea.vmem %s0, %s304
        %p306 = pneg %p55
        %p307 = pneg %p52
        %p308 = scmp.lt.s32.totalorder %s24, 1
        %s309 = scalar_select %p308, %s24, 1
        %s310 = scalar_lea.vmem %s1, %s309
        %p311 = pneg %p81
        %p312 = pneg %p78
        %p313 = pneg %p102
        %p314 = pneg %p99
        %p315 = pneg %p123
        %p316 = pneg %p120
        %p317 = pneg %p144
        %p318 = pneg %p141
        %p319 = pneg %p165
        %p320 = pneg %p162
        %p321 = pneg %p186
        %p322 = pneg %p183
        %p323 = pneg %p214
        %p324 = pneg %p211
        %p325 = scmp.lt.s32.totalorder %s24, 1
        %s326 = scalar_select %p325, %s24, 1
        %p327 = scmp.lt.s32.totalorder %s25, 0
        %s328 = scalar_select %p327, %s25, 0
        %s329 = sadd.s32 %s328, %s326
        %s330 = smul.addr %s329, 8
        %s331 = scalar_lea.vmem %s7, %s330
        %p332 = scmp.lt.s32.totalorder %s24, 1
        %s333 = scalar_select %p332, %s24, 1
        %p334 = scmp.lt.s32.totalorder %s25, 0
        %s335 = scalar_select %p334, %s25, 0
        %s336 = sadd.s32 %s335, %s333
        %s337 = smul.addr %s336, 8
        %s338 = scalar_lea.vmem %s0, %s337
        %p339 = scmp.lt.s32.totalorder %s24, 1
        %s340 = scalar_select %p339, %s24, 1
        %s341 = scalar_lea.vmem %s1, %s340
        %p342 = scmp.lt.s32.totalorder %s24, 1
        %s343 = scalar_select %p342, %s24, 1
        %p344 = scmp.lt.s32.totalorder %s25, 0
        %s345 = scalar_select %p344, %s25, 0
        %s346 = sadd.s32 %s345, %s343
        %s347 = smul.addr %s346, 8
        %s348 = scalar_lea.vmem %s7, %s347
        %v350 = vld [vmem:[%s338] sm:$0xff]
        %v351 = vpack.c.bf16 %v350, %v350
        %v352 = vld [vmem:[#allocation2] sm:$0xf]
        %v353 = vld [vmem:[#allocation2 + $0x4] sm:$0xf]
        %v354 = vld [vmem:[#allocation2 + $0x8] sm:$0xf]
        %v355 = vld [vmem:[#allocation2 + $0xc] sm:$0xf]
        %v356 = vld [vmem:[%s341] sm:$0x1]
        %v358 = vlaneseq
        %v359 = vshrl.u32 %v358, 7
        %v360 = vsub.s32 0, %v359
        %v361 = vrot.slane %v356, %v360
        %v367 = vunpack.c.l.b16 %v352
        %v368 = vunpack.c.l.b16 %v353
        %v369 = vunpack.c.l.b16 %v354
        %v370 = vunpack.c.l.b16 %v355
        %v371 = vpack.c.b16 %v368, %v367
        %v372 = vpack.c.b16 %v370, %v369
        %vm375 = vcmask 261120
        %v377 = vsel %vm375, %v351, 0
        %379 = vmatprep.subr.bf16.mxu0 0
        %380 = vmatpush1.bf16.msra.mxu0 %v371
        %381 = vmatprep.subr.bf16.mxu0 0
        %382 = vmatpush1.bf16.msra.mxu0 %v372
        %383 = vmatprep.subr.bf16.mxu0 0
        %384 = vmatpush1.bf16.msra.mxu0 0
        %385 = vmatprep.subr.bf16.mxu0 0
        %386 = vmatpush1.bf16.msra.mxu0 0
        %387 = vmatprep.subr.bf16.mxu0 0
        %388 = vmatpush1.bf16.msra.mxu0 0
        %389 = vmatprep.subr.bf16.mxu0 0
        %390 = vmatpush1.bf16.msra.mxu0 0
        %391 = vmatprep.subr.bf16.mxu0 0
        %392 = vmatpush1.bf16.msra.mxu0 0
        %393 = vmatprep.subr.bf16.mxu0 0
        %394 = vmatpush1.bf16.msra.mxu0 0
        %395 = vmatprep.subr.bf16.mxu0 0
        %396 = vmatpush1.bf16.msra.mxu0 0
        %397 = vmatprep.subr.bf16.mxu0 0
        %398 = vmatpush1.bf16.msra.mxu0 0
        %399 = vmatprep.subr.bf16.mxu0 0
        %400 = vmatpush1.bf16.msra.mxu0 0
        %401 = vmatprep.subr.bf16.mxu0 0
        %402 = vmatpush1.bf16.msra.mxu0 0
        %403 = vmatprep.subr.bf16.mxu0 0
        %404 = vmatpush1.bf16.msra.mxu0 0
        %405 = vmatprep.subr.bf16.mxu0 0
        %406 = vmatpush1.bf16.msra.mxu0 0
        %407 = vmatprep.subr.bf16.mxu0 0
        %408 = vmatpush1.bf16.msra.mxu0 0
        %409 = vmatprep.subr.bf16.mxu0 0
        %410 = vmatpush1.bf16.msra.mxu0 0
        %411 = vmatprep.mubr.bf16.mxu0 0
        %412 = vmatmul.mubr.bf16.gmra.mrb[0].mxu0 %v377
        %v413 = vpop.f32.mrb[0].mxu0
        %v414 = vadd.f32 %v361, %v413
        %v415 = vpop.f32.mrb[0].mxu0
        %v416 = vpop.f32.mrb[0].mxu0
        %v417 = vpop.f32.mrb[0].mxu0
        %418 = vdwg.mxu0
        %v419 = vmax.f32 %v414, 0.0
        %v420 = vpack.c.bf16 %v419, %v419
        %v421 = vld [vmem:[#allocation4] sm:$0xf]
        %v422 = vld [vmem:[#allocation4 + $0x4] sm:$0xf]
        %v423 = vld [vmem:[#allocation4 + $0x8] sm:$0xf]
        %v424 = vld [vmem:[#allocation4 + $0xc] sm:$0xf]
        %v425 = vld [vmem:[%s4] sm:$0x1]
        %v427 = vlaneseq
        %v428 = vshrl.u32 %v427, 7
        %v429 = vsub.s32 0, %v428
        %v430 = vrot.slane %v425, %v429
        %v436 = vunpack.c.l.b16 %v421
        %v437 = vunpack.c.l.b16 %v422
        %v438 = vunpack.c.l.b16 %v423
        %v439 = vunpack.c.l.b16 %v424
        %v440 = vpack.c.b16 %v437, %v436
        %v441 = vpack.c.b16 %v439, %v438
        %v445 = vsel %vm375, %v420, 0
        %447 = vmatprep.subr.bf16.mxu0 0
        %448 = vmatpush1.bf16.msra.mxu0 %v440
        %449 = vmatprep.subr.bf16.mxu0 0
        %450 = vmatpush1.bf16.msra.mxu0 %v441
        %451 = vmatprep.subr.bf16.mxu0 0
        %452 = vmatpush1.bf16.msra.mxu0 0
        %453 = vmatprep.subr.bf16.mxu0 0
        %454 = vmatpush1.bf16.msra.mxu0 0
        %455 = vmatprep.subr.bf16.mxu0 0
        %456 = vmatpush1.bf16.msra.mxu0 0
        %457 = vmatprep.subr.bf16.mxu0 0
        %458 = vmatpush1.bf16.msra.mxu0 0
        %459 = vmatprep.subr.bf16.mxu0 0
        %460 = vmatpush1.bf16.msra.mxu0 0
        %461 = vmatprep.subr.bf16.mxu0 0
        %462 = vmatpush1.bf16.msra.mxu0 0
        %463 = vmatprep.subr.bf16.mxu0 0
        %464 = vmatpush1.bf16.msra.mxu0 0
        %465 = vmatprep.subr.bf16.mxu0 0
        %466 = vmatpush1.bf16.msra.mxu0 0
        %467 = vmatprep.subr.bf16.mxu0 0
        %468 = vmatpush1.bf16.msra.mxu0 0
        %469 = vmatprep.subr.bf16.mxu0 0
        %470 = vmatpush1.bf16.msra.mxu0 0
        %471 = vmatprep.subr.bf16.mxu0 0
        %472 = vmatpush1.bf16.msra.mxu0 0
        %473 = vmatprep.subr.bf16.mxu0 0
        %474 = vmatpush1.bf16.msra.mxu0 0
        %475 = vmatprep.subr.bf16.mxu0 0
        %476 = vmatpush1.bf16.msra.mxu0 0
        %477 = vmatprep.subr.bf16.mxu0 0
        %478 = vmatpush1.bf16.msra.mxu0 0
        %479 = vmatprep.mubr.bf16.mxu0 0
        %480 = vmatmul.mubr.bf16.gmra.mrb[0].mxu0 %v445
        %v481 = vpop.f32.mrb[0].mxu0
        %v482 = vadd.f32 %v430, %v481
        %v483 = vpop.f32.mrb[0].mxu0
        %v484 = vpop.f32.mrb[0].mxu0
        %v485 = vpop.f32.mrb[0].mxu0
        %486 = vdwg.mxu0
        %v487 = vmax.f32 %v482, 0.0
        %v488 = vpack.c.bf16 %v487, %v487
        %v489 = vld [vmem:[%s5] sm:$0xf]
        %v490 = vld [vmem:[%s5 + $0x4] sm:$0xf]
        %v491 = vld [vmem:[%s5 + $0x8] sm:$0xf]
        %v492 = vld [vmem:[%s5 + $0xc] sm:$0xf]
        %v493 = vld [vmem:[%s6] sm:$0x1]
        %v495 = vlaneseq
        %v496 = vshrl.u32 %v495, 7
        %v497 = vsub.s32 0, %v496
        %v498 = vrot.slane %v493, %v497
        %v504 = vunpack.c.l.b16 %v489
        %v505 = vunpack.c.l.b16 %v490
        %v506 = vunpack.c.l.b16 %v491
        %v507 = vunpack.c.l.b16 %v492
        %v508 = vpack.c.b16 %v505, %v504
        %v509 = vpack.c.b16 %v507, %v506
        %v513 = vsel %vm375, %v488, 0
        %515 = vmatprep.subr.bf16.mxu0 0
        %516 = vmatpush1.bf16.msra.mxu0 %v508
        %517 = vmatprep.subr.bf16.mxu0 0
        %518 = vmatpush1.bf16.msra.mxu0 %v509
        %519 = vmatprep.subr.bf16.mxu0 0
        %520 = vmatpush1.bf16.msra.mxu0 0
        %521 = vmatprep.subr.bf16.mxu0 0
        %522 = vmatpush1.bf16.msra.mxu0 0
        %523 = vmatprep.subr.bf16.mxu0 0
        %524 = vmatpush1.bf16.msra.mxu0 0
        %525 = vmatprep.subr.bf16.mxu0 0
        %526 = vmatpush1.bf16.msra.mxu0 0
        %527 = vmatprep.subr.bf16.mxu0 0
        %528 = vmatpush1.bf16.msra.mxu0 0
        %529 = vmatprep.subr.bf16.mxu0 0
        %530 = vmatpush1.bf16.msra.mxu0 0
        %531 = vmatprep.subr.bf16.mxu0 0
        %532 = vmatpush1.bf16.msra.mxu0 0
        %533 = vmatprep.subr.bf16.mxu0 0
        %534 = vmatpush1.bf16.msra.mxu0 0
        %535 = vmatprep.subr.bf16.mxu0 0
        %536 = vmatpush1.bf16.msra.mxu0 0
        %537 = vmatprep.subr.bf16.mxu0 0
        %538 = vmatpush1.bf16.msra.mxu0 0
        %539 = vmatprep.subr.bf16.mxu0 0
        %540 = vmatpush1.bf16.msra.mxu0 0
        %541 = vmatprep.subr.bf16.mxu0 0
        %542 = vmatpush1.bf16.msra.mxu0 0
        %543 = vmatprep.subr.bf16.mxu0 0
        %544 = vmatpush1.bf16.msra.mxu0 0
        %545 = vmatprep.subr.bf16.mxu0 0
        %546 = vmatpush1.bf16.msra.mxu0 0
        %547 = vmatprep.mubr.bf16.mxu0 0
        %548 = vmatmul.mubr.bf16.gmra.mrb[0].mxu0 %v513
        %v549 = vpop.f32.mrb[0].mxu0
        %v550 = vadd.f32 %v498, %v549
        %v551 = vpop.f32.mrb[0].mxu0
        %v552 = vpop.f32.mrb[0].mxu0
        %v553 = vpop.f32.mrb[0].mxu0
        %554 = vdwg.mxu0
        %vm555 = vcmask 15360
        %556 = vst.msk [vmem:[%s348] sm:$0xff] %vm555, %v550
        %p557 = scmp.lt.s32.totalorder %s24, 1
        %s558 = scalar_select %p557, %s24, 1
        %p559 = scmp.lt.s32.totalorder %s25, 0
        %s560 = scalar_select %p559, %s25, 0
        %s561 = sadd.s32 %s560, %s558
        %s562 = smul.addr %s561, 8
        %s563 = scalar_lea.vmem %s7, %s562
        // Predicated region
        $region57: #{tpu_custom_call.1} parent=47 // pred_check
          %p564 = pneg %p211
        $region58: #{tpu_custom_call.1} parent=47 // pred_check_branch
          %566 = sbr.rel (%p564) target = $region60
        $region59: #{tpu_custom_call.1} parent=47 // pred_region
          _
        $region60: #{tpu_custom_call.1} parent=47 // pred_fallthru
          _
      $region48: #{tpu_custom_call.1} parent=5 // pred_fallthru
        _
      %p567 = scmp.le.s32.totalorder 2, %s15
      // Predicated region
      $region61: #{tpu_custom_call.1} parent=5 // pred_check
        %p568 = pneg %p567
      $region62: #{tpu_custom_call.1} parent=5 // pred_check_branch
        %570 = sbr.rel (%p568) target = $region64
      $region63: #{tpu_custom_call.1} parent=5 // pred_region
        %s571 = ssub.s32 %s15, 2
        // Predicated region
        $region65: #{tpu_custom_call.1} parent=63 // pred_check
          %p572 = pneg %p217
        $region66: #{tpu_custom_call.1} parent=63 // pred_check_branch
          %574 = sbr.rel (%p572) target = $region68
        $region67: #{tpu_custom_call.1} parent=63 // pred_region
          %p575 = scmp.lt.s32.totalorder %s26, 1
          %s576 = scalar_select %p575, %s26, 1
          %p577 = scmp.lt.s32.totalorder %s27, 0
          %s578 = scalar_select %p577, %s27, 0
          %s579 = sadd.s32 %s578, %s576
          %s580 = smul.addr %s579, 8
          %s581 = scalar_lea.vmem %s7, %s580
        $region68: #{tpu_custom_call.1} parent=63 // pred_fallthru
          _
      $region64: #{tpu_custom_call.1} parent=5 // pred_fallthru
        _
    $region6: #{tpu_custom_call.1} parent=1 // loop_footer
      %s19 = sadd.s32 1, %s15
    $region7: #{tpu_custom_call.1} parent=1 // loop_footer_branch
      %14 = sbr.rel target = $region3
    $region8: #{tpu_custom_call.1} parent=1 // loop_exit
      _
    %582 = vsyncpa [#allocation3], 1
    %s583 = scalar_lea.sflag [#allocation3], 1
    %584 = vsyncpa %s583, 1
    %585 = vsyncpa [#allocation5], 1

</llo_original>
